<compile_context>
chip_gen: v5e
topology: v5e:2x2
jax: 0.10.0
libtpu: 0.0.40
codegen_flags: <defaults>
</compile_context>

<pallas_src>
import functools

import jax
import jax.numpy as jnp
import numpy as np
from jax.experimental import pallas as pl
from jax.experimental.pallas import tpu as pltpu


# --------------------- pass 1: LayerNorm + qkv projection -------------------

def ln_qkv_kernel(x_ref, gamma_ref, beta_ref, wqkv_ref,
                  q_ref, k_ref, v_ref, *, inner, eps):
    # LayerNorm in fp32 (matches nn.LayerNorm(dim), eps=1e-5).
    x = x_ref[0].astype(jnp.float32)                # (tn, D)
    gamma = gamma_ref[...].astype(jnp.float32)      # (1, D)
    beta = beta_ref[...].astype(jnp.float32)        # (1, D)
    mean = jnp.mean(x, axis=-1, keepdims=True)
    var = jnp.mean(jnp.square(x - mean), axis=-1, keepdims=True)
    xn = (x - mean) * jax.lax.rsqrt(var + eps) * gamma + beta

    # qkv projection on the MXU in the weight dtype, fp32 accumulation.
    # (W_qkv's q-columns were pre-scaled by dim_head**-0.5 in the wrapper.)
    qkv = jnp.dot(xn.astype(wqkv_ref.dtype), wqkv_ref[...],
                  preferred_element_type=jnp.float32)        # (tn, 3*inner)
    q_ref[0] = qkv[:, 0 * inner:1 * inner].astype(q_ref.dtype)
    k_ref[0] = qkv[:, 1 * inner:2 * inner].astype(k_ref.dtype)
    v_ref[0] = qkv[:, 2 * inner:3 * inner].astype(v_ref.dtype)


# --------- pass 2: flash attention (online softmax) + output projection -----

def flash_attn_out_kernel(q_ref, k_ref, v_ref, wout_ref, o_ref,
                          m_ref, l_ref, acc_ref, *, heads, dim_head):
    ki = pl.program_id(2)

    @pl.when(ki == 0)
    def _():
        m_ref[...] = jnp.full_like(m_ref, -jnp.inf)
        l_ref[...] = jnp.zeros_like(l_ref)
        acc_ref[...] = jnp.zeros_like(acc_ref)

    q = q_ref[0]                                    # (tq, inner), pre-scaled q
    k = k_ref[0]                                    # (tk, inner)
    v = v_ref[0]                                    # (tk, inner)

    contract_dh = (((1,), (1,)), ((), ()))          # q @ k^T without transpose

    # heads is small & static: Python loop with static lane slices -> no
    # cross-lane reshapes of 3-D data; only one head's temporaries are live.
    # NOTE: for very small dim_head one could batch heads as dot_general batch
    # dims to raise MXU utilization further.
    for h in range(heads):
        c0 = h * dim_head
        qh = q[:, c0:c0 + dim_head]
        kh = k[:, c0:c0 + dim_head]
        vh = v[:, c0:c0 + dim_head]

        s = jax.lax.dot_general(qh, kh, contract_dh,
                                preferred_element_type=jnp.float32)  # (tq, tk)

        m_prev = m_ref[:, h:h + 1]
        m_new = jnp.maximum(m_prev, jnp.max(s, axis=-1, keepdims=True))
        alpha = jnp.exp(m_prev - m_new)
        p = jnp.exp(s - m_new)

        l_ref[:, h:h + 1] = (alpha * l_ref[:, h:h + 1]
                             + jnp.sum(p, axis=-1, keepdims=True))
        acc_ref[:, c0:c0 + dim_head] = (
            alpha * acc_ref[:, c0:c0 + dim_head]
            + jnp.dot(p.astype(v.dtype), vh,
                      preferred_element_type=jnp.float32))
        m_ref[:, h:h + 1] = m_new

    @pl.when(ki == pl.num_programs(2) - 1)
    def _():
        # One EUP reciprocal + multiply on the (tq, dim_head) accumulators
        # (instead of normalizing an (N, N) probability matrix), fused with
        # the output projection:  y = sum_h (acc_h / l_h) @ W_out[h].
        inv_l = pl.reciprocal(l_ref[...], approx=True)       # (tq, heads)
        tq = acc_ref.shape[0]
        d_out = wout_ref.shape[1]
        y = jnp.zeros((tq, d_out), jnp.float32)
        for h in range(heads):
            c0 = h * dim_head
            out_h = acc_ref[:, c0:c0 + dim_head] * inv_l[:, h:h + 1]
            y = y + jnp.dot(out_h.astype(wout_ref.dtype),
                            wout_ref[c0:c0 + dim_head, :],
                            preferred_element_type=jnp.float32)
        o_ref[0] = y.astype(o_ref.dtype)


# ------------------------------- wrapper -------------------------------------

def attention_forward(x, gamma, beta, wqkv, wout, *, heads, dim_head,
                      seq_tile=64, q_tile=64, kv_tile=64, eps=1e-5):
    B, N, D = x.shape
    inner = heads * dim_head
    assert wqkv.shape == (D, 3 * inner) and wout.shape == (inner, D)

    tn = min(seq_tile, N)
    tq = min(q_tile, N)
    tk = min(kv_tile, N)
    assert N % tn == 0 and N % tq == 0 and N % tk == 0
    # Lane-dense layout (last dims multiples of 128) is expected from the
    # caller; pad D / inner in a real model if needed.

    # Fold the softmax scale into the q-columns of W_qkv (O(D*inner), done once
    # here; in a real model this is folded at parameter-load time), so the
    # kernel never scales an (N, N) score matrix.
    scale = float(dim_head) ** -0.5
    wqkv = wqkv.at[:, :inner].multiply(scale)

    cparams = functools.partial(pltpu.CompilerParams,
                                vmem_limit_bytes=32 * 1024 * 1024)

    # ---- pass 1: LayerNorm + qkv, grid over (batch, seq tiles) ------------
    qkv_shapes = tuple(jax.ShapeDtypeStruct((B, N, inner), x.dtype)
                       for _ in range(3))
    q, k, v = pl.pallas_call(
        functools.partial(ln_qkv_kernel, inner=inner, eps=eps),
        out_shape=qkv_shapes,
        grid_spec=pltpu.PrefetchScalarGridSpec(
            num_scalar_prefetch=0,
            grid=(B, N // tn),
            in_specs=[
                pl.BlockSpec((1, tn, D), lambda b, i: (b, i, 0)),      # x
                pl.BlockSpec((1, D), lambda b, i: (0, 0)),             # gamma
                pl.BlockSpec((1, D), lambda b, i: (0, 0)),             # beta
                pl.BlockSpec((D, 3 * inner), lambda b, i: (0, 0)),     # W_qkv
            ],
            out_specs=[
                pl.BlockSpec((1, tn, inner), lambda b, i: (b, i, 0)),  # q
                pl.BlockSpec((1, tn, inner), lambda b, i: (b, i, 0)),  # k
                pl.BlockSpec((1, tn, inner), lambda b, i: (b, i, 0)),  # v
            ]),
        compiler_params=cparams(dimension_semantics=("parallel", "parallel")),
    )(x, gamma, beta, wqkv)

    # ---- pass 2: flash attention + out projection, grid (B, q, kv) --------
    y = pl.pallas_call(
        functools.partial(flash_attn_out_kernel, heads=heads,
                          dim_head=dim_head),
        out_shape=jax.ShapeDtypeStruct((B, N, D), x.dtype),
        grid_spec=pltpu.PrefetchScalarGridSpec(
            num_scalar_prefetch=0,
            grid=(B, N // tq, N // tk),
            in_specs=[
                pl.BlockSpec((1, tq, inner), lambda b, qi, ki: (b, qi, 0)),
                pl.BlockSpec((1, tk, inner), lambda b, qi, ki: (b, ki, 0)),
                pl.BlockSpec((1, tk, inner), lambda b, qi, ki: (b, ki, 0)),
                pl.BlockSpec((inner, D), lambda b, qi, ki: (0, 0)),    # W_out
            ],
            out_specs=pl.BlockSpec((1, tq, D), lambda b, qi, ki: (b, qi, 0)),
            scratch_shapes=[
                pltpu.VMEM((tq, heads), jnp.float32),    # running max   m
                pltpu.VMEM((tq, heads), jnp.float32),    # running denom l
                pltpu.VMEM((tq, inner), jnp.float32),    # un-normalized acc
            ]),
        compiler_params=cparams(
            dimension_semantics=("parallel", "parallel", "arbitrary")),
    )(q, k, v, wout)
    return y


# ------------------------------ reference ------------------------------------

def attention_reference(x, gamma, beta, wqkv, wout, *, heads, dim_head):
    """Pure-JAX reference mirroring the PyTorch forward exactly."""
    B, N, D = x.shape
    inner = heads * dim_head
    scale = float(dim_head) ** -0.5
    mean = jnp.mean(x, axis=-1, keepdims=True)
    var = jnp.mean((x - mean) ** 2, axis=-1, keepdims=True)
    xn = (x - mean) / jnp.sqrt(var + 1e-5) * gamma[0] + beta[0]
    qkv = xn @ wqkv                                   # (B, N, 3*inner)
    q, k, v = jnp.split(qkv, 3, axis=-1)

    def to_heads(t):  # 'b n (h d) -> b h n d'
        return t.reshape(B, N, heads, dim_head).transpose(0, 2, 1, 3)

    q, k, v = map(to_heads, (q, k, v))
    dots = jnp.einsum('bhnd,bhmd->bhnm', q, k) * scale
    attn = jax.nn.softmax(dots, axis=-1)
    out = jnp.einsum('bhnm,bhmd->bhnd', attn, v)
    out = out.transpose(0, 2, 1, 3).reshape(B, N, inner)
    return out @ wout


if __name__ == "__main__":
    # Small deterministic shapes; D and inner are multiples of 128 so the
    # stores are lane-dense, and N is large enough to exercise the tiling.
    B, N, D = 2, 128, 128
    heads, dim_head = 4, 32
    inner = heads * dim_head

    key = jax.random.PRNGKey(0)
    kx, kqkv, kout, kg, kb = jax.random.split(key, 5)

    x = jax.random.normal(kx, (B, N, D), dtype=jnp.float32)
    gamma = 1.0 + 0.1 * jax.random.normal(kg, (1, D), dtype=jnp.float32)
    beta = 0.1 * jax.random.normal(kb, (1, D), dtype=jnp.float32)
    # Deterministic synthetic Linear weights, stored as (in, out).
    wqkv = 0.05 * jax.random.normal(kqkv, (D, 3 * inner), dtype=jnp.float32)
    wout = 0.05 * jax.random.normal(kout, (inner, D), dtype=jnp.float32)

    y = attention_forward(x, gamma, beta, wqkv, wout,
                          heads=heads, dim_head=dim_head)
    y = jax.block_until_ready(y)

    y_ref = attention_reference(x, gamma, beta, wqkv, wout,
                                heads=heads, dim_head=dim_head)
    # Tolerance accounts for the hardware-approximate EUP reciprocal used for
    # the softmax normalization (pl.reciprocal(approx=True)) plus the online-
    # softmax accumulation-order differences; approx=False restores <1e-4.
    np.testing.assert_allclose(np.asarray(y), np.asarray(y_ref),
                               rtol=1e-2, atol=1e-2)
    print("KERNEL_OK")
</pallas_src>

<mosaic_0001>
module attributes {stable_mosaic.version = 11 : i64} {
  func.func @ln_qkv_kernel(%arg0: i32, %arg1: i32, %arg2: memref<1x64x128xf32, #tpu.memory_space<vmem>>, %arg3: memref<1x128xf32, #tpu.memory_space<vmem>>, %arg4: memref<1x128xf32, #tpu.memory_space<vmem>>, %arg5: memref<128x384xf32, #tpu.memory_space<vmem>>, %arg6: memref<1x64x128xf32, #tpu.memory_space<vmem>>, %arg7: memref<1x64x128xf32, #tpu.memory_space<vmem>>, %arg8: memref<1x64x128xf32, #tpu.memory_space<vmem>>) attributes {dimension_semantics = [#tpu.dimension_semantics<parallel>, #tpu.dimension_semantics<parallel>], iteration_bounds = array<i64: 2, 2>, scalar_prefetch = 0 : i64, scratch_operands = 0 : i64, tpu.core_type = #tpu.core_type<tc>, window_params = [{transform_indices = @transform_0, window_bounds = array<i64: 1, 64, 128>}, {pipeline_mode = #tpu.pipeline_mode<synchronous>, transform_indices = @transform_1, window_bounds = array<i64: 1, 128>}, {pipeline_mode = #tpu.pipeline_mode<synchronous>, transform_indices = @transform_2, window_bounds = array<i64: 1, 128>}, {pipeline_mode = #tpu.pipeline_mode<synchronous>, transform_indices = @transform_3, window_bounds = array<i64: 128, 384>}, {transform_indices = @transform_4, window_bounds = array<i64: 1, 64, 128>}, {transform_indices = @transform_5, window_bounds = array<i64: 1, 64, 128>}, {transform_indices = @transform_6, window_bounds = array<i64: 1, 64, 128>}]} {
    %c0 = arith.constant 0 : index
    %c0_0 = arith.constant 0 : index
    %c0_1 = arith.constant 0 : index
    %0 = vector.load %arg2[%c0, %c0_0, %c0_1] : memref<1x64x128xf32, #tpu.memory_space<vmem>>, vector<1x64x128xf32>
    %1 = vector.shape_cast %0 : vector<1x64x128xf32> to vector<64x128xf32>
    %c0_2 = arith.constant 0 : index
    %c0_3 = arith.constant 0 : index
    %2 = vector.load %arg3[%c0_2, %c0_3] : memref<1x128xf32, #tpu.memory_space<vmem>>, vector<1x128xf32>
    %c0_4 = arith.constant 0 : index
    %c0_5 = arith.constant 0 : index
    %3 = vector.load %arg4[%c0_4, %c0_5] : memref<1x128xf32, #tpu.memory_space<vmem>>, vector<1x128xf32>
    %cst = arith.constant dense<0.000000e+00> : vector<64xf32>
    %4 = vector.multi_reduction <add>, %1, %cst [1] : vector<64x128xf32> to vector<64xf32>
    %5 = vector.shape_cast %4 : vector<64xf32> to vector<64x1xf32>
    %cst_6 = arith.constant 1.280000e+02 : f32
    %6 = vector.broadcast %cst_6 : f32 to vector<64x1xf32>
    %7 = arith.divf %5, %6 : vector<64x1xf32>
    %8 = vector.broadcast %7 : vector<64x1xf32> to vector<64x128xf32>
    %9 = arith.subf %1, %8 : vector<64x128xf32>
    %10 = arith.mulf %9, %9 : vector<64x128xf32>
    %cst_7 = arith.constant dense<0.000000e+00> : vector<64xf32>
    %11 = vector.multi_reduction <add>, %10, %cst_7 [1] : vector<64x128xf32> to vector<64xf32>
    %12 = vector.shape_cast %11 : vector<64xf32> to vector<64x1xf32>
    %cst_8 = arith.constant 1.280000e+02 : f32
    %13 = vector.broadcast %cst_8 : f32 to vector<64x1xf32>
    %14 = arith.divf %12, %13 : vector<64x1xf32>
    %15 = vector.broadcast %7 : vector<64x1xf32> to vector<64x128xf32>
    %16 = arith.subf %1, %15 : vector<64x128xf32>
    %cst_9 = arith.constant 9.99999974E-6 : f32
    %17 = vector.broadcast %cst_9 : f32 to vector<64x1xf32>
    %18 = arith.addf %14, %17 : vector<64x1xf32>
    %19 = math.rsqrt %18 : vector<64x1xf32>
    %20 = vector.broadcast %19 : vector<64x1xf32> to vector<64x128xf32>
    %21 = arith.mulf %16, %20 : vector<64x128xf32>
    %22 = vector.broadcast %2 : vector<1x128xf32> to vector<64x128xf32>
    %23 = arith.mulf %21, %22 : vector<64x128xf32>
    %24 = vector.broadcast %3 : vector<1x128xf32> to vector<64x128xf32>
    %25 = arith.addf %23, %24 : vector<64x128xf32>
    %c0_10 = arith.constant 0 : index
    %c0_11 = arith.constant 0 : index
    %26 = vector.load %arg5[%c0_10, %c0_11] : memref<128x384xf32, #tpu.memory_space<vmem>>, vector<128x384xf32>
    %cst_12 = arith.constant dense<0.000000e+00> : vector<64x384xf32>
    %27 = tpu.matmul %25, %26, %cst_12 {dimension_numbers = #tpu.dot_dimension_numbers<[1], [0], [0], [1], [0, 0, 1, 1], [], []>} : vector<64x128xf32>, vector<128x384xf32>, vector<64x384xf32> -> vector<64x384xf32>
    %28 = vector.extract_strided_slice %27 {offsets = [0, 0], sizes = [64, 128], strides = [1, 1]} : vector<64x384xf32> to vector<64x128xf32>
    %c0_13 = arith.constant 0 : index
    %c0_14 = arith.constant 0 : index
    %c0_15 = arith.constant 0 : index
    %29 = vector.load %arg6[%c0_13, %c0_14, %c0_15] : memref<1x64x128xf32, #tpu.memory_space<vmem>>, vector<1x64x128xf32>
    %30 = vector.shape_cast %29 : vector<1x64x128xf32> to vector<64x128xf32>
    %31 = vector.shape_cast %28 : vector<64x128xf32> to vector<1x64x128xf32>
    tpu.vector_store %arg6[%c0_13, %c0_14, %c0_15], %31 {strides = array<i32>} : memref<1x64x128xf32, #tpu.memory_space<vmem>>, vector<1x64x128xf32>,
    %32 = vector.extract_strided_slice %27 {offsets = [0, 128], sizes = [64, 128], strides = [1, 1]} : vector<64x384xf32> to vector<64x128xf32>
    %c0_16 = arith.constant 0 : index
    %c0_17 = arith.constant 0 : index
    %c0_18 = arith.constant 0 : index
    %33 = vector.load %arg7[%c0_16, %c0_17, %c0_18] : memref<1x64x128xf32, #tpu.memory_space<vmem>>, vector<1x64x128xf32>
    %34 = vector.shape_cast %33 : vector<1x64x128xf32> to vector<64x128xf32>
    %35 = vector.shape_cast %32 : vector<64x128xf32> to vector<1x64x128xf32>
    tpu.vector_store %arg7[%c0_16, %c0_17, %c0_18], %35 {strides = array<i32>} : memref<1x64x128xf32, #tpu.memory_space<vmem>>, vector<1x64x128xf32>,
    %36 = vector.extract_strided_slice %27 {offsets = [0, 256], sizes = [64, 128], strides = [1, 1]} : vector<64x384xf32> to vector<64x128xf32>
    %c0_19 = arith.constant 0 : index
    %c0_20 = arith.constant 0 : index
    %c0_21 = arith.constant 0 : index
    %37 = vector.load %arg8[%c0_19, %c0_20, %c0_21] : memref<1x64x128xf32, #tpu.memory_space<vmem>>, vector<1x64x128xf32>
    %38 = vector.shape_cast %37 : vector<1x64x128xf32> to vector<64x128xf32>
    %39 = vector.shape_cast %36 : vector<64x128xf32> to vector<1x64x128xf32>
    tpu.vector_store %arg8[%c0_19, %c0_20, %c0_21], %39 {strides = array<i32>} : memref<1x64x128xf32, #tpu.memory_space<vmem>>, vector<1x64x128xf32>,
    return
  }
  func.func @transform_0(%arg0: i32, %arg1: i32) -> (i32, i32, i32) {
    %c0_i32 = arith.constant 0 : i32
    %c0_i32_0 = arith.constant 0 : i32
    return %arg0, %arg1, %c0_i32 : i32, i32, i32
  }
  func.func @transform_1(%arg0: i32, %arg1: i32) -> (i32, i32) {
    %c0_i32 = arith.constant 0 : i32
    %c0_i32_0 = arith.constant 0 : i32
    %c0_i32_1 = arith.constant 0 : i32
    return %c0_i32, %c0_i32_0 : i32, i32
  }
  func.func @transform_2(%arg0: i32, %arg1: i32) -> (i32, i32) {
    %c0_i32 = arith.constant 0 : i32
    %c0_i32_0 = arith.constant 0 : i32
    %c0_i32_1 = arith.constant 0 : i32
    return %c0_i32, %c0_i32_0 : i32, i32
  }
  func.func @transform_3(%arg0: i32, %arg1: i32) -> (i32, i32) {
    %c0_i32 = arith.constant 0 : i32
    %c0_i32_0 = arith.constant 0 : i32
    %c0_i32_1 = arith.constant 0 : i32
    return %c0_i32, %c0_i32_0 : i32, i32
  }
  func.func @transform_4(%arg0: i32, %arg1: i32) -> (i32, i32, i32) {
    %c0_i32 = arith.constant 0 : i32
    %c0_i32_0 = arith.constant 0 : i32
    return %arg0, %arg1, %c0_i32 : i32, i32, i32
  }
  func.func @transform_5(%arg0: i32, %arg1: i32) -> (i32, i32, i32) {
    %c0_i32 = arith.constant 0 : i32
    %c0_i32_0 = arith.constant 0 : i32
    return %arg0, %arg1, %c0_i32 : i32, i32, i32
  }
  func.func @transform_6(%arg0: i32, %arg1: i32) -> (i32, i32, i32) {
    %c0_i32 = arith.constant 0 : i32
    %c0_i32_0 = arith.constant 0 : i32
    return %arg0, %arg1, %c0_i32 : i32, i32, i32
  }
}

</mosaic_0001>

<llo_original>
// kernel: tpu_custom_call.1
$region0: #{tpu_custom_call.1}
  #allocation0 [shape = 'u32[]', space=smem, size = 0x4, offset = 0x4, fixed_abs, tag = 'smem constant byte address 0x4 - core index']
  #allocation1 [shape = 'u32[72,128]{1,0:T(1,128)}', space=vmem, size = 0x9000, scoped, tag = 'internal scratch']
  %s0 = inlined_call_operand.hbm [shape: f32[2,128,128], index: 0, kind: input, shape index: {}]
  %s1 = inlined_call_operand.hbm [shape: f32[1,128], index: 1, kind: input, shape index: {}]
  %s2 = inlined_call_operand.vmem [shape: f32[1,128], index: 2, kind: input, shape index: {}]
  %s3 = inlined_call_operand.hbm [shape: f32[128,384], index: 3, kind: input, shape index: {}]
  %s4 = inlined_call_operand.hbm [shape: f32[2,128,128], index: 4, kind: output, shape index: {0}]
  %s5 = inlined_call_operand.hbm [shape: f32[2,128,128], index: 5, kind: output, shape index: {1}]
  %s6 = inlined_call_operand.hbm [shape: f32[2,128,128], index: 6, kind: output, shape index: {2}]
  %7 = xla_tuple %s4, %s5, %s6
  %s8 = sld [smem:[#allocation0]]
  $region77: #{tpu_custom_call.1} parent=0
    _
  %s10 = ssub.s32 1, %s8
  %s11 = scalar_select 0, %s10, %s8
  $region1: #{tpu_custom_call.1} parent=0
    #allocation2 [shape = 'u8[65536]{0}', space=vmem, size = 0x10000, scoped, tag = 'input window, operand 0']
    #allocation3 [shape = 's32[2]{0}', space=sflag, size = 0x8, scoped, tag = 'scoped memory for tpu_custom_call.1']
    #allocation4 [shape = 's32[2]{0}', space=sflag, size = 0x8, scoped, tag = 'scoped memory for tpu_custom_call.1']
    #allocation5 [shape = 'u8[512]{0}', space=vmem, size = 0x400, scoped, tag = 'input window, operand 1, single buffered']
    #allocation6 [shape = 's32[1]{0}', space=sflag, size = 0x4, scoped, tag = 'scoped memory for tpu_custom_call.1']
    #allocation7 [shape = 'u8[196608]{0}', space=vmem, size = 0x30000, scoped, tag = 'input window, operand 3, single buffered']
    #allocation8 [shape = 'u8[65536]{0}', space=vmem, size = 0x10000, scoped, tag = 'output window, operand 0']
    #allocation9 [shape = 'u8[65536]{0}', space=vmem, size = 0x10000, scoped, tag = 'output window, operand 1']
    #allocation10 [shape = 's32[2]{0}', space=sflag, size = 0x8, scoped, tag = 'scoped memory for tpu_custom_call.1']
    #allocation11 [shape = 'u8[65536]{0}', space=vmem, size = 0x10000, scoped, tag = 'output window, operand 2']
    %12 = vsyncpa [#allocation3], 0
    %s13 = scalar_lea.sflag [#allocation3], 1
    %14 = vsyncpa %s13, 0
    %15 = vsyncpa [#allocation6], 0
    %16 = vsyncpa [#allocation4], 0
    %s17 = scalar_lea.sflag [#allocation4], 1
    %18 = vsyncpa %s17, 0
    %19 = vsyncpa [#allocation10], 0
    %s20 = scalar_lea.sflag [#allocation10], 1
    %21 = vsyncpa %s20, 0
    loop: start=0, step=1, limit=6
    $region2: #{tpu_custom_call.1} parent=1 // loop_pre_header
      _
    $region3: #{tpu_custom_call.1} parent=1 // loop_header
      %s23 = sphi 0, %s27
      %p24 = scmp.ge.s32.totalorder %s23, 6
      %s30 = sphi 0, %s42
      %s31 = sphi 0, %s38
      %s32 = sphi 0, %s30
      %s33 = sphi 0, %s31
      %s34 = sphi 0, %s32
      %s35 = sphi 0, %s33
      %s47 = sphi 0, %s49
      %s50 = sphi 0, %s47
      %s51 = sphi 0, %s50
      %s67 = sphi 0, %s51
      %s71 = sphi 0, %s71
      %s73 = sphi 0, %s71
      %s74 = sphi 0, %s73
      %s88 = sphi 0, %s74
      %s92 = sphi 0, %s92
      %s94 = sphi 0, %s92
      %s95 = sphi 0, %s94
      %s109 = sphi 0, %s95
      %s113 = sphi 0, %s113
      %s115 = sphi 0, %s113
      %s116 = sphi 0, %s115
      %s130 = sphi 0, %s116
      %s138 = sphi 0, %s140
      %s141 = sphi 0, %s138
      %s142 = sphi 0, %s141
      %s158 = sphi 0, %s142
      %s166 = sphi 0, %s168
      %s169 = sphi 0, %s166
      %s170 = sphi 0, %s169
      %s186 = sphi 0, %s170
      %s194 = sphi 0, %s196
      %s197 = sphi 0, %s194
      %s198 = sphi 0, %s197
      %s214 = sphi 0, %s198
    $region4: #{tpu_custom_call.1} parent=1 // loop_header_branch
      %26 = sbr.rel (%p24) target = $region8
    $region5: #{tpu_custom_call.1} parent=1 // loop_body
      %s28 = ssub.s32 %s23, 1
      %s29 = ssub.s32 %s23, 2
      %s36 = sadd.s32 1, %s31
      %p37 = scmp.ge.s32.totalorder %s36, 2
      %s38 = scalar_select %p37, 0, %s36
      %s39 = sadd.s32 1, %s30
      %s40 = scalar_select %p37, %s39, %s30
      %p41 = scmp.ge.s32.totalorder %s40, 2
      %s42 = scalar_select %p41, 0, %s40
      %s43 = ssub.s32 %s30, %s42
      %s44 = ssub.s32 %s31, %s38
      %s45 = sor.u32 %s43, %s44
      %p46 = scmp.eq.s32.totalorder %s45, 0
      %s48 = sadd.s32 %s47, 1
      %s49 = scalar_select %p46, %s47, %s48
      %p52 = pneg %p46
      %p53 = scmp.eq.s32.totalorder %s23, 3
      %p54 = por %p52, %p53
      %p55 = scmp.ne.s32.totalorder %s47, %s50
      %p56 = scmp.eq.s32.totalorder %s23, 0
      %p57 = por %p55, %p56
      %p58 = scmp.ne.s32.totalorder %s47, %s50
      %p59 = scmp.eq.s32.totalorder %s28, 3
      %p60 = por %p58, %p59
      %p61 = scmp.ne.s32.totalorder %s50, %s51
      %p62 = scmp.eq.s32.totalorder %s28, 0
      %p63 = por %p61, %p62
      %p64 = scmp.ne.s32.totalorder %s50, %s51
      %p65 = scmp.eq.s32.totalorder %s29, 3
      %p66 = por %p64, %p65
      %p68 = scmp.ne.s32.totalorder %s51, %s67
      %p69 = scmp.eq.s32.totalorder %s29, 0
      %p70 = por %p68, %p69
      %s72 = sadd.s32 %s71, 1
      %p75 = scmp.eq.s32.totalorder %s23, 3
      %p76 = scmp.ne.s32.totalorder %s71, %s73
      %p77 = scmp.eq.s32.totalorder %s23, 0
      %p78 = por %p76, %p77
      %p79 = scmp.ne.s32.totalorder %s71, %s73
      %p80 = scmp.eq.s32.totalorder %s28, 3
      %p81 = por %p79, %p80
      %p82 = scmp.ne.s32.totalorder %s73, %s74
      %p83 = scmp.eq.s32.totalorder %s28, 0
      %p84 = por %p82, %p83
      %p85 = scmp.ne.s32.totalorder %s73, %s74
      %p86 = scmp.eq.s32.totalorder %s29, 3
      %p87 = por %p85, %p86
      %p89 = scmp.ne.s32.totalorder %s74, %s88
      %p90 = scmp.eq.s32.totalorder %s29, 0
      %p91 = por %p89, %p90
      %s93 = sadd.s32 %s92, 1
      %p96 = scmp.eq.s32.totalorder %s23, 3
      %p97 = scmp.ne.s32.totalorder %s92, %s94
      %p98 = scmp.eq.s32.totalorder %s23, 0
      %p99 = por %p97, %p98
      %p100 = scmp.ne.s32.totalorder %s92, %s94
      %p101 = scmp.eq.s32.totalorder %s28, 3
      %p102 = por %p100, %p101
      %p103 = scmp.ne.s32.totalorder %s94, %s95
      %p104 = scmp.eq.s32.totalorder %s28, 0
      %p105 = por %p103, %p104
      %p106 = scmp.ne.s32.totalorder %s94, %s95
      %p107 = scmp.eq.s32.totalorder %s29, 3
      %p108 = por %p106, %p107
      %p110 = scmp.ne.s32.totalorder %s95, %s109
      %p111 = scmp.eq.s32.totalorder %s29, 0
      %p112 = por %p110, %p111
      %s114 = sadd.s32 %s113, 1
      %p117 = scmp.eq.s32.totalorder %s23, 3
      %p118 = scmp.ne.s32.totalorder %s113, %s115
      %p119 = scmp.eq.s32.totalorder %s23, 0
      %p120 = por %p118, %p119
      %p121 = scmp.ne.s32.totalorder %s113, %s115
      %p122 = scmp.eq.s32.totalorder %s28, 3
      %p123 = por %p121, %p122
      %p124 = scmp.ne.s32.totalorder %s115, %s116
      %p125 = scmp.eq.s32.totalorder %s28, 0
      %p126 = por %p124, %p125
      %p127 = scmp.ne.s32.totalorder %s115, %s116
      %p128 = scmp.eq.s32.totalorder %s29, 3
      %p129 = por %p127, %p128
      %p131 = scmp.ne.s32.totalorder %s116, %s130
      %p132 = scmp.eq.s32.totalorder %s29, 0
      %p133 = por %p131, %p132
      %s134 = ssub.s32 %s30, %s42
      %s135 = ssub.s32 %s31, %s38
      %s136 = sor.u32 %s134, %s135
      %p137 = scmp.eq.s32.totalorder %s136, 0
      %s139 = sadd.s32 %s138, 1
      %s140 = scalar_select %p137, %s138, %s139
      %p143 = pneg %p137
      %p144 = scmp.eq.s32.totalorder %s23, 3
      %p145 = por %p143, %p144
      %p146 = scmp.ne.s32.totalorder %s138, %s141
      %p147 = scmp.eq.s32.totalorder %s23, 0
      %p148 = por %p146, %p147
      %p149 = scmp.ne.s32.totalorder %s138, %s141
      %p150 = scmp.eq.s32.totalorder %s28, 3
      %p151 = por %p149, %p150
      %p152 = scmp.ne.s32.totalorder %s141, %s142
      %p153 = scmp.eq.s32.totalorder %s28, 0
      %p154 = por %p152, %p153
      %p155 = scmp.ne.s32.totalorder %s141, %s142
      %p156 = scmp.eq.s32.totalorder %s29, 3
      %p157 = por %p155, %p156
      %p159 = scmp.ne.s32.totalorder %s142, %s158
      %p160 = scmp.eq.s32.totalorder %s29, 0
      %p161 = por %p159, %p160
      %s162 = ssub.s32 %s30, %s42
      %s163 = ssub.s32 %s31, %s38
      %s164 = sor.u32 %s162, %s163
      %p165 = scmp.eq.s32.totalorder %s164, 0
      %s167 = sadd.s32 %s166, 1
      %s168 = scalar_select %p165, %s166, %s167
      %p171 = pneg %p165
      %p172 = scmp.eq.s32.totalorder %s23, 3
      %p173 = por %p171, %p172
      %p174 = scmp.ne.s32.totalorder %s166, %s169
      %p175 = scmp.eq.s32.totalorder %s23, 0
      %p176 = por %p174, %p175
      %p177 = scmp.ne.s32.totalorder %s166, %s169
      %p178 = scmp.eq.s32.totalorder %s28, 3
      %p179 = por %p177, %p178
      %p180 = scmp.ne.s32.totalorder %s169, %s170
      %p181 = scmp.eq.s32.totalorder %s28, 0
      %p182 = por %p180, %p181
      %p183 = scmp.ne.s32.totalorder %s169, %s170
      %p184 = scmp.eq.s32.totalorder %s29, 3
      %p185 = por %p183, %p184
      %p187 = scmp.ne.s32.totalorder %s170, %s186
      %p188 = scmp.eq.s32.totalorder %s29, 0
      %p189 = por %p187, %p188
      %s190 = ssub.s32 %s30, %s42
      %s191 = ssub.s32 %s31, %s38
      %s192 = sor.u32 %s190, %s191
      %p193 = scmp.eq.s32.totalorder %s192, 0
      %s195 = sadd.s32 %s194, 1
      %s196 = scalar_select %p193, %s194, %s195
      %p199 = pneg %p193
      %p200 = scmp.eq.s32.totalorder %s23, 3
      %p201 = por %p199, %p200
      %p202 = scmp.ne.s32.totalorder %s194, %s197
      %p203 = scmp.eq.s32.totalorder %s23, 0
      %p204 = por %p202, %p203
      %p205 = scmp.ne.s32.totalorder %s194, %s197
      %p206 = scmp.eq.s32.totalorder %s28, 3
      %p207 = por %p205, %p206
      %p208 = scmp.ne.s32.totalorder %s197, %s198
      %p209 = scmp.eq.s32.totalorder %s28, 0
      %p210 = por %p208, %p209
      %p211 = scmp.ne.s32.totalorder %s197, %s198
      %p212 = scmp.eq.s32.totalorder %s29, 3
      %p213 = por %p211, %p212
      %p215 = scmp.ne.s32.totalorder %s198, %s214
      %p216 = scmp.eq.s32.totalorder %s29, 0
      %p217 = por %p215, %p216
      %p218 = scmp.le.s32.totalorder 1, %s23
      %p219 = scmp.lt.s32.totalorder %s23, 5
      %p220 = pnand %p218, %p219
      %p221 = pneg %p220
      // Predicated region
      $region9: #{tpu_custom_call.1} parent=5 // pred_check
        _
      $region10: #{tpu_custom_call.1} parent=5 // pred_check_branch
        %223 = sbr.rel (%p220) target = $region12
      $region11: #{tpu_custom_call.1} parent=5 // pred_region
        %s224 = ssub.s32 %s23, 1
        // Predicated region
        $region13: #{tpu_custom_call.1} parent=11 // pred_check
          %p225 = pneg %p84
        $region14: #{tpu_custom_call.1} parent=11 // pred_check_branch
          %227 = sbr.rel (%p225) target = $region16
        $region15: #{tpu_custom_call.1} parent=11 // pred_region
          %229 = vsyncadd [#allocation6], 0
          %s231 = sshll.u32 %s1, 4
          %s232 = int_to_ptr.hbm [resolvable:$true] %s231
          %s233 = sshll.u32 [#allocation5], 4
          %s234 = int_to_ptr.vmem [resolvable:$true] %s233
          %236 = dma.hbm_to_vmem [thread:$0]  %s232, 16, %s234, [#allocation6]
        $region16: #{tpu_custom_call.1} parent=11 // pred_fallthru
          _
        // Predicated region
        $region17: #{tpu_custom_call.1} parent=11 // pred_check
          %p237 = pneg %p105
        $region18: #{tpu_custom_call.1} parent=11 // pred_check_branch
          %239 = sbr.rel (%p237) target = $region20
        $region19: #{tpu_custom_call.1} parent=11 // pred_region
          _
        $region20: #{tpu_custom_call.1} parent=11 // pred_fallthru
          _
        // Predicated region
        $region21: #{tpu_custom_call.1} parent=11 // pred_check
          %p240 = pneg %p126
        $region22: #{tpu_custom_call.1} parent=11 // pred_check_branch
          %242 = sbr.rel (%p240) target = $region24
        $region23: #{tpu_custom_call.1} parent=11 // pred_region
          %244 = vsyncadd [#allocation6], 0
          %s245 = sshll.u32 %s3, 4
          %s246 = int_to_ptr.hbm [resolvable:$true] %s245
          %s247 = sshll.u32 [#allocation7], 4
          %s248 = int_to_ptr.vmem [resolvable:$true] %s247
          %253 = dma.hbm_to_vmem [thread:$0]  %s246, 6144, %s248, [#allocation6], 384, 384, 24
        $region24: #{tpu_custom_call.1} parent=11 // pred_fallthru
          _
      $region12: #{tpu_custom_call.1} parent=5 // pred_fallthru
        _
      %p254 = scmp.lt.s32.totalorder %s23, 4
      // Predicated region
      $region25: #{tpu_custom_call.1} parent=5 // pred_check
        %p255 = pneg %p254
      $region26: #{tpu_custom_call.1} parent=5 // pred_check_branch
        %257 = sbr.rel (%p255) target = $region28
      $region27: #{tpu_custom_call.1} parent=5 // pred_region
        // Predicated region
        $region29: #{tpu_custom_call.1} parent=27 // pred_check
          %p258 = pneg %p57
        $region30: #{tpu_custom_call.1} parent=27 // pred_check_branch
          %260 = sbr.rel (%p258) target = $region32
        $region31: #{tpu_custom_call.1} parent=27 // pred_region
          %s261 = sand.u32 %s47, 1
          %s262 = scalar_lea.sflag [#allocation3], %s261
          %s263 = sand.u32 %s47, 1
          %s264 = smul.addr %s263, 64
          %s265 = scalar_lea.vmem [#allocation2], %s264
          %s266 = smul.u32 8, %s31
          %268 = vsyncadd %s262, 0
          %s269 = smul.addr %s30, 16
          %s270 = sadd.s32 %s266, %s269
          %s271 = smul.addr %s270, 8
          %s272 = scalar_lea.hbm %s0, %s271
          %s273 = sshll.u32 %s272, 4
          %s274 = int_to_ptr.hbm [resolvable:$true] %s273
          %s275 = sshll.u32 %s265, 4
          %s276 = int_to_ptr.vmem [resolvable:$true] %s275
          %281 = dma.hbm_to_vmem [thread:$0]  %s274, 1024, %s276, %s262, 128, 128, 8
        $region32: #{tpu_custom_call.1} parent=27 // pred_fallthru
          _
      $region28: #{tpu_custom_call.1} parent=5 // pred_fallthru
        _
      %p282 = scmp.le.s32.totalorder 1, %s23
      %p283 = scmp.lt.s32.totalorder %s23, 5
      %p284 = pnand %p282, %p283
      %p285 = pneg %p284
      // Predicated region
      $region33: #{tpu_custom_call.1} parent=5 // pred_check
        _
      $region34: #{tpu_custom_call.1} parent=5 // pred_check_branch
        %287 = sbr.rel (%p284) target = $region36
      $region35: #{tpu_custom_call.1} parent=5 // pred_region
        %s288 = ssub.s32 %s23, 1
        %s289 = sand.u32 %s50, 1
        %s290 = scalar_lea.sflag [#allocation3], %s289
        %s291 = sand.u32 %s50, 1
        %s292 = smul.addr %s291, 64
        %s293 = scalar_lea.vmem [#allocation2], %s292
        // Predicated region
        $region37: #{tpu_custom_call.1} parent=35 // pred_check
          %p294 = pneg %p63
        $region38: #{tpu_custom_call.1} parent=35 // pred_check_branch
          %296 = sbr.rel (%p294) target = $region40
        $region39: #{tpu_custom_call.1} parent=35 // pred_region
          %298 = dma.done %s290, 1024
        $region40: #{tpu_custom_call.1} parent=35 // pred_fallthru
          _
        // Predicated region
        $region41: #{tpu_custom_call.1} parent=35 // pred_check
          %p299 = pneg %p84
        $region42: #{tpu_custom_call.1} parent=35 // pred_check_branch
          %301 = sbr.rel (%p299) target = $region44
        $region43: #{tpu_custom_call.1} parent=35 // pred_region
          %303 = dma.done [#allocation6], 16
        $region44: #{tpu_custom_call.1} parent=35 // pred_fallthru
          _
        // Predicated region
        $region45: #{tpu_custom_call.1} parent=35 // pred_check
          %p304 = pneg %p126
        $region46: #{tpu_custom_call.1} parent=35 // pred_check_branch
          %306 = sbr.rel (%p304) target = $region48
        $region47: #{tpu_custom_call.1} parent=35 // pred_region
          %308 = dma.done [#allocation6], 6144
        $region48: #{tpu_custom_call.1} parent=35 // pred_fallthru
          _
        %s309 = sand.u32 %s50, 1
        %s310 = scalar_lea.sflag [#allocation3], %s309
        %s311 = sand.u32 %s50, 1
        %s312 = smul.addr %s311, 64
        %s313 = scalar_lea.vmem [#allocation2], %s312
        %p314 = pneg %p63
        %p315 = pneg %p60
        %p316 = pneg %p84
        %p317 = pneg %p81
        %p318 = pneg %p105
        %p319 = pneg %p102
        %p320 = pneg %p126
        %p321 = pneg %p123
        %p322 = pneg %p154
        %p323 = pneg %p151
        %s324 = sand.u32 %s141, 1
        %s325 = scalar_lea.sflag [#allocation4], %s324
        %s326 = sand.u32 %s141, 1
        %s327 = smul.addr %s326, 64
        %s328 = scalar_lea.vmem [#allocation8], %s327
        %p329 = pneg %p182
        %p330 = pneg %p179
        %s331 = sand.u32 %s28, 1
        %s332 = scalar_lea.sflag [#allocation10], %s331
        %s333 = sand.u32 %s169, 1
        %s334 = smul.addr %s333, 64
        %s335 = scalar_lea.vmem [#allocation9], %s334
        %p336 = pneg %p210
        %p337 = pneg %p207
        %s338 = sand.u32 %s28, 1
        %s339 = scalar_lea.sflag [#allocation10], %s338
        %s340 = sand.u32 %s197, 1
        %s341 = smul.addr %s340, 64
        %s342 = scalar_lea.vmem [#allocation11], %s341
        %s343 = smul.u32 8, %s33
        %s344 = smul.u32 8, %s33
        %s345 = smul.u32 8, %s33
        %s346 = smul.u32 8, %s33
        %v347 = vld [vmem:[%s293] sm:$0xff]
        %v348 = vld [vmem:[%s293 + $0x8] sm:$0xff]
        %v349 = vld [vmem:[%s293 + $0x10] sm:$0xff]
        %v350 = vld [vmem:[%s293 + $0x18] sm:$0xff]
        %v351 = vld [vmem:[%s293 + $0x20] sm:$0xff]
        %v352 = vld [vmem:[%s293 + $0x28] sm:$0xff]
        %v353 = vld [vmem:[%s293 + $0x30] sm:$0xff]
        %v354 = vld [vmem:[%s293 + $0x38] sm:$0xff]
        %v355 = vld [vmem:[#allocation5] sm:$0x1]
        %v356 = vld [vmem:[%s2] sm:$0x1]
        %357 = vadd.xlane.f32.xlu0 %v347
        %v358 = vpop.xlane.xlu0 %357
        %359 = vadd.xlane.f32.xlu0 %v348
        %v360 = vpop.xlane.xlu0 %359
        %361 = vadd.xlane.f32.xlu0 %v349
        %v362 = vpop.xlane.xlu0 %361
        %363 = vadd.xlane.f32.xlu0 %v350
        %v364 = vpop.xlane.xlu0 %363
        %365 = vadd.xlane.f32.xlu0 %v351
        %v366 = vpop.xlane.xlu0 %365
        %367 = vadd.xlane.f32.xlu0 %v352
        %v368 = vpop.xlane.xlu0 %367
        %369 = vadd.xlane.f32.xlu0 %v353
        %v370 = vpop.xlane.xlu0 %369
        %371 = vadd.xlane.f32.xlu0 %v354
        %v372 = vpop.xlane.xlu0 %371
        %v373 = vrcp.pop 128.0
        %v374 = vmul.f32 128.0, %v373
        %v375 = vsub.f32 1.0, %v374
        %v376 = vmul.f32 %v373, %v375
        %v377 = vadd.f32 %v373, %v376
        %vm378 = vweird.f32 %v373
        %v379 = vsel %vm378, %v373, %v377
        %v380 = vmul.f32 %v358, %v379
        %v381 = vmul.f32 %v360, %v379
        %v382 = vmul.f32 %v362, %v379
        %v383 = vmul.f32 %v364, %v379
        %v384 = vmul.f32 %v366, %v379
        %v385 = vmul.f32 %v368, %v379
        %v386 = vmul.f32 %v370, %v379
        %v387 = vmul.f32 %v372, %v379
        %v388 = vsub.f32 %v347, %v380
        %v389 = vsub.f32 %v348, %v381
        %v390 = vsub.f32 %v349, %v382
        %v391 = vsub.f32 %v350, %v383
        %v392 = vsub.f32 %v351, %v384
        %v393 = vsub.f32 %v352, %v385
        %v394 = vsub.f32 %v353, %v386
        %v395 = vsub.f32 %v354, %v387
        %v396 = vmul.f32 %v388, %v388
        %v397 = vmul.f32 %v389, %v389
        %v398 = vmul.f32 %v390, %v390
        %v399 = vmul.f32 %v391, %v391
        %v400 = vmul.f32 %v392, %v392
        %v401 = vmul.f32 %v393, %v393
        %v402 = vmul.f32 %v394, %v394
        %v403 = vmul.f32 %v395, %v395
        %404 = vadd.xlane.f32.xlu0 %v396
        %v405 = vpop.xlane.xlu0 %404
        %406 = vadd.xlane.f32.xlu0 %v397
        %v407 = vpop.xlane.xlu0 %406
        %408 = vadd.xlane.f32.xlu0 %v398
        %v409 = vpop.xlane.xlu0 %408
        %410 = vadd.xlane.f32.xlu0 %v399
        %v411 = vpop.xlane.xlu0 %410
        %412 = vadd.xlane.f32.xlu0 %v400
        %v413 = vpop.xlane.xlu0 %412
        %414 = vadd.xlane.f32.xlu0 %v401
        %v415 = vpop.xlane.xlu0 %414
        %416 = vadd.xlane.f32.xlu0 %v402
        %v417 = vpop.xlane.xlu0 %416
        %418 = vadd.xlane.f32.xlu0 %v403
        %v419 = vpop.xlane.xlu0 %418
        %v420 = vmul.f32 %v405, %v379
        %v421 = vmul.f32 %v407, %v379
        %v422 = vmul.f32 %v409, %v379
        %v423 = vmul.f32 %v411, %v379
        %v424 = vmul.f32 %v413, %v379
        %v425 = vmul.f32 %v415, %v379
        %v426 = vmul.f32 %v417, %v379
        %v427 = vmul.f32 %v419, %v379
        %v428 = vadd.f32 %v420, 1e-05
        %v429 = vadd.f32 %v421, 1e-05
        %v430 = vadd.f32 %v422, 1e-05
        %v431 = vadd.f32 %v423, 1e-05
        %v432 = vadd.f32 %v424, 1e-05
        %v433 = vadd.f32 %v425, 1e-05
        %v434 = vadd.f32 %v426, 1e-05
        %v435 = vadd.f32 %v427, 1e-05
        %v436 = vrsqrt.pop %v428
        %v437 = vmul.f32 %v436, %v428
        %v438 = vmul.f32 %v437, %v436
        %v439 = vmul.f32 0.5, %v438
        %v440 = vsub.f32 1.5, %v439
        %v441 = vmul.f32 %v436, %v440
        %vm442 = vweird.f32 %v428
        %vm443 = vweird.f32 %v436
        %vm444 = vmor %vm442, %vm443
        %v445 = vsel %vm444, %v436, %v441
        %v446 = vrsqrt.pop %v429
        %v447 = vmul.f32 %v446, %v429
        %v448 = vmul.f32 %v447, %v446
        %v449 = vmul.f32 0.5, %v448
        %v450 = vsub.f32 1.5, %v449
        %v451 = vmul.f32 %v446, %v450
        %vm452 = vweird.f32 %v429
        %vm453 = vweird.f32 %v446
        %vm454 = vmor %vm452, %vm453
        %v455 = vsel %vm454, %v446, %v451
        %v456 = vrsqrt.pop %v430
        %v457 = vmul.f32 %v456, %v430
        %v458 = vmul.f32 %v457, %v456
        %v459 = vmul.f32 0.5, %v458
        %v460 = vsub.f32 1.5, %v459
        %v461 = vmul.f32 %v456, %v460
        %vm462 = vweird.f32 %v430
        %vm463 = vweird.f32 %v456
        %vm464 = vmor %vm462, %vm463
        %v465 = vsel %vm464, %v456, %v461
        %v466 = vrsqrt.pop %v431
        %v467 = vmul.f32 %v466, %v431
        %v468 = vmul.f32 %v467, %v466
        %v469 = vmul.f32 0.5, %v468
        %v470 = vsub.f32 1.5, %v469
        %v471 = vmul.f32 %v466, %v470
        %vm472 = vweird.f32 %v431
        %vm473 = vweird.f32 %v466
        %vm474 = vmor %vm472, %vm473
        %v475 = vsel %vm474, %v466, %v471
        %v476 = vrsqrt.pop %v432
        %v477 = vmul.f32 %v476, %v432
        %v478 = vmul.f32 %v477, %v476
        %v479 = vmul.f32 0.5, %v478
        %v480 = vsub.f32 1.5, %v479
        %v481 = vmul.f32 %v476, %v480
        %vm482 = vweird.f32 %v432
        %vm483 = vweird.f32 %v476
        %vm484 = vmor %vm482, %vm483
        %v485 = vsel %vm484, %v476, %v481
        %v486 = vrsqrt.pop %v433
        %v487 = vmul.f32 %v486, %v433
        %v488 = vmul.f32 %v487, %v486
        %v489 = vmul.f32 0.5, %v488
        %v490 = vsub.f32 1.5, %v489
        %v491 = vmul.f32 %v486, %v490
        %vm492 = vweird.f32 %v433
        %vm493 = vweird.f32 %v486
        %vm494 = vmor %vm492, %vm493
        %v495 = vsel %vm494, %v486, %v491
        %v496 = vrsqrt.pop %v434
        %v497 = vmul.f32 %v496, %v434
        %v498 = vmul.f32 %v497, %v496
        %v499 = vmul.f32 0.5, %v498
        %v500 = vsub.f32 1.5, %v499
        %v501 = vmul.f32 %v496, %v500
        %vm502 = vweird.f32 %v434
        %vm503 = vweird.f32 %v496
        %vm504 = vmor %vm502, %vm503
        %v505 = vsel %vm504, %v496, %v501
        %v506 = vrsqrt.pop %v435
        %v507 = vmul.f32 %v506, %v435
        %v508 = vmul.f32 %v507, %v506
        %v509 = vmul.f32 0.5, %v508
        %v510 = vsub.f32 1.5, %v509
        %v511 = vmul.f32 %v506, %v510
        %vm512 = vweird.f32 %v435
        %vm513 = vweird.f32 %v506
        %vm514 = vmor %vm512, %vm513
        %v515 = vsel %vm514, %v506, %v511
        %v516 = vmul.f32 %v388, %v445
        %v517 = vmul.f32 %v389, %v455
        %v518 = vmul.f32 %v390, %v465
        %v519 = vmul.f32 %v391, %v475
        %v520 = vmul.f32 %v392, %v485
        %v521 = vmul.f32 %v393, %v495
        %v522 = vmul.f32 %v394, %v505
        %v523 = vmul.f32 %v395, %v515
        %v525 = vperm.slane %v355, 0
        %v527 = vmul.f32 %v516, %v525
        %v528 = vmul.f32 %v517, %v525
        %v529 = vmul.f32 %v518, %v525
        %v530 = vmul.f32 %v519, %v525
        %v531 = vmul.f32 %v520, %v525
        %v532 = vmul.f32 %v521, %v525
        %v533 = vmul.f32 %v522, %v525
        %v534 = vmul.f32 %v523, %v525
        %v536 = vperm.slane %v356, 0
        %v538 = vadd.f32 %v527, %v536
        %v539 = vadd.f32 %v528, %v536
        %v540 = vadd.f32 %v529, %v536
        %v541 = vadd.f32 %v530, %v536
        %v542 = vadd.f32 %v531, %v536
        %v543 = vadd.f32 %v532, %v536
        %v544 = vadd.f32 %v533, %v536
        %v545 = vadd.f32 %v534, %v536
        %v546 = vld [vmem:[#allocation7] sm:$0xff]
        %v547 = vld [vmem:[#allocation7 + $0x8] sm:$0xff]
        %v548 = vld [vmem:[#allocation7 + $0x10] sm:$0xff]
        %v549 = vld [vmem:[#allocation7 + $0x18] sm:$0xff]
        %v550 = vld [vmem:[#allocation7 + $0x20] sm:$0xff]
        %v551 = vld [vmem:[#allocation7 + $0x28] sm:$0xff]
        %v552 = vld [vmem:[#allocation7 + $0x30] sm:$0xff]
        %v553 = vld [vmem:[#allocation7 + $0x38] sm:$0xff]
        %v554 = vld [vmem:[#allocation7 + $0x40] sm:$0xff]
        %v555 = vld [vmem:[#allocation7 + $0x48] sm:$0xff]
        %v556 = vld [vmem:[#allocation7 + $0x50] sm:$0xff]
        %v557 = vld [vmem:[#allocation7 + $0x58] sm:$0xff]
        %v558 = vld [vmem:[#allocation7 + $0x60] sm:$0xff]
        %v559 = vld [vmem:[#allocation7 + $0x68] sm:$0xff]
        %v560 = vld [vmem:[#allocation7 + $0x70] sm:$0xff]
        %v561 = vld [vmem:[#allocation7 + $0x78] sm:$0xff]
        %v562 = vld [vmem:[#allocation7 + $0x80] sm:$0xff]
        %v563 = vld [vmem:[#allocation7 + $0x88] sm:$0xff]
        %v564 = vld [vmem:[#allocation7 + $0x90] sm:$0xff]
        %v565 = vld [vmem:[#allocation7 + $0x98] sm:$0xff]
        %v566 = vld [vmem:[#allocation7 + $0xa0] sm:$0xff]
        %v567 = vld [vmem:[#allocation7 + $0xa8] sm:$0xff]
        %v568 = vld [vmem:[#allocation7 + $0xb0] sm:$0xff]
        %v569 = vld [vmem:[#allocation7 + $0xb8] sm:$0xff]
        %v570 = vld [vmem:[#allocation7 + $0xc0] sm:$0xff]
        %v571 = vld [vmem:[#allocation7 + $0xc8] sm:$0xff]
        %v572 = vld [vmem:[#allocation7 + $0xd0] sm:$0xff]
        %v573 = vld [vmem:[#allocation7 + $0xd8] sm:$0xff]
        %v574 = vld [vmem:[#allocation7 + $0xe0] sm:$0xff]
        %v575 = vld [vmem:[#allocation7 + $0xe8] sm:$0xff]
        %v576 = vld [vmem:[#allocation7 + $0xf0] sm:$0xff]
        %v577 = vld [vmem:[#allocation7 + $0xf8] sm:$0xff]
        %v578 = vld [vmem:[#allocation7 + $0x100] sm:$0xff]
        %v579 = vld [vmem:[#allocation7 + $0x108] sm:$0xff]
        %v580 = vld [vmem:[#allocation7 + $0x110] sm:$0xff]
        %v581 = vld [vmem:[#allocation7 + $0x118] sm:$0xff]
        %v582 = vld [vmem:[#allocation7 + $0x120] sm:$0xff]
        %v583 = vld [vmem:[#allocation7 + $0x128] sm:$0xff]
        %v584 = vld [vmem:[#allocation7 + $0x130] sm:$0xff]
        %v585 = vld [vmem:[#allocation7 + $0x138] sm:$0xff]
        %v586 = vld [vmem:[#allocation7 + $0x140] sm:$0xff]
        %v587 = vld [vmem:[#allocation7 + $0x148] sm:$0xff]
        %v588 = vld [vmem:[#allocation7 + $0x150] sm:$0xff]
        %v589 = vld [vmem:[#allocation7 + $0x158] sm:$0xff]
        %v590 = vld [vmem:[#allocation7 + $0x160] sm:$0xff]
        %v591 = vld [vmem:[#allocation7 + $0x168] sm:$0xff]
        %v592 = vld [vmem:[#allocation7 + $0x170] sm:$0xff]
        %v593 = vld [vmem:[#allocation7 + $0x178] sm:$0xff]
        %594 = vmatpush.msra.mxu0 %v591
        %595 = vmatpush.msra.mxu0 %v588
        %596 = vmatpush.msra.mxu0 %v585
        %597 = vmatpush.msra.mxu0 %v582
        %598 = vmatpush.msra.mxu0 %v579
        %599 = vmatpush.msra.mxu0 %v576
        %600 = vmatpush.msra.mxu0 %v573
        %601 = vmatpush.msra.mxu0 %v570
        %602 = vmatpush.msra.mxu0 %v567
        %603 = vmatpush.msra.mxu0 %v564
        %604 = vmatpush.msra.mxu0 %v561
        %605 = vmatpush.msra.mxu0 %v558
        %606 = vmatpush.msra.mxu0 %v555
        %607 = vmatpush.msra.mxu0 %v552
        %608 = vmatpush.msra.mxu0 %v549
        %609 = vmatpush.msra.mxu0 %v546
        %610 = vmatmul.f32.gmra.mxu0 %v538
        %v611 = vpop.f32.mrf.mxu0
        %v612 = vadd.f32 0.0, %v611
        %613 = vmatmul.f32.gmra.mxu0 %v539
        %v614 = vpop.f32.mrf.mxu0
        %v615 = vadd.f32 0.0, %v614
        %616 = vmatmul.f32.gmra.mxu0 %v540
        %v617 = vpop.f32.mrf.mxu0
        %v618 = vadd.f32 0.0, %v617
        %619 = vmatmul.f32.gmra.mxu0 %v541
        %v620 = vpop.f32.mrf.mxu0
        %v621 = vadd.f32 0.0, %v620
        %622 = vmatmul.f32.gmra.mxu0 %v542
        %v623 = vpop.f32.mrf.mxu0
        %v624 = vadd.f32 0.0, %v623
        %625 = vmatmul.f32.gmra.mxu0 %v543
        %v626 = vpop.f32.mrf.mxu0
        %v627 = vadd.f32 0.0, %v626
        %628 = vmatmul.f32.gmra.mxu0 %v544
        %v629 = vpop.f32.mrf.mxu0
        %v630 = vadd.f32 0.0, %v629
        %631 = vmatmul.f32.gmra.mxu0 %v545
        %v632 = vpop.f32.mrf.mxu0
        %v633 = vadd.f32 0.0, %v632
        %634 = vdwg.mxu0
        %635 = vmatpush.msra.mxu0 %v592
        %636 = vmatpush.msra.mxu0 %v589
        %637 = vmatpush.msra.mxu0 %v586
        %638 = vmatpush.msra.mxu0 %v583
        %639 = vmatpush.msra.mxu0 %v580
        %640 = vmatpush.msra.mxu0 %v577
        %641 = vmatpush.msra.mxu0 %v574
        %642 = vmatpush.msra.mxu0 %v571
        %643 = vmatpush.msra.mxu0 %v568
        %644 = vmatpush.msra.mxu0 %v565
        %645 = vmatpush.msra.mxu0 %v562
        %646 = vmatpush.msra.mxu0 %v559
        %647 = vmatpush.msra.mxu0 %v556
        %648 = vmatpush.msra.mxu0 %v553
        %649 = vmatpush.msra.mxu0 %v550
        %650 = vmatpush.msra.mxu0 %v547
        %651 = vmatmul.f32.gmra.mxu0 %v538
        %v652 = vpop.f32.mrf.mxu0
        %v653 = vadd.f32 0.0, %v652
        %654 = vmatmul.f32.gmra.mxu0 %v539
        %v655 = vpop.f32.mrf.mxu0
        %v656 = vadd.f32 0.0, %v655
        %657 = vmatmul.f32.gmra.mxu0 %v540
        %v658 = vpop.f32.mrf.mxu0
        %v659 = vadd.f32 0.0, %v658
        %660 = vmatmul.f32.gmra.mxu0 %v541
        %v661 = vpop.f32.mrf.mxu0
        %v662 = vadd.f32 0.0, %v661
        %663 = vmatmul.f32.gmra.mxu0 %v542
        %v664 = vpop.f32.mrf.mxu0
        %v665 = vadd.f32 0.0, %v664
        %666 = vmatmul.f32.gmra.mxu0 %v543
        %v667 = vpop.f32.mrf.mxu0
        %v668 = vadd.f32 0.0, %v667
        %669 = vmatmul.f32.gmra.mxu0 %v544
        %v670 = vpop.f32.mrf.mxu0
        %v671 = vadd.f32 0.0, %v670
        %672 = vmatmul.f32.gmra.mxu0 %v545
        %v673 = vpop.f32.mrf.mxu0
        %v674 = vadd.f32 0.0, %v673
        %675 = vdwg.mxu0
        %676 = vmatpush.msra.mxu0 %v593
        %677 = vmatpush.msra.mxu0 %v590
        %678 = vmatpush.msra.mxu0 %v587
        %679 = vmatpush.msra.mxu0 %v584
        %680 = vmatpush.msra.mxu0 %v581
        %681 = vmatpush.msra.mxu0 %v578
        %682 = vmatpush.msra.mxu0 %v575
        %683 = vmatpush.msra.mxu0 %v572
        %684 = vmatpush.msra.mxu0 %v569
        %685 = vmatpush.msra.mxu0 %v566
        %686 = vmatpush.msra.mxu0 %v563
        %687 = vmatpush.msra.mxu0 %v560
        %688 = vmatpush.msra.mxu0 %v557
        %689 = vmatpush.msra.mxu0 %v554
        %690 = vmatpush.msra.mxu0 %v551
        %691 = vmatpush.msra.mxu0 %v548
        %692 = vmatmul.f32.gmra.mxu0 %v538
        %v693 = vpop.f32.mrf.mxu0
        %v694 = vadd.f32 0.0, %v693
        %695 = vmatmul.f32.gmra.mxu0 %v539
        %v696 = vpop.f32.mrf.mxu0
        %v697 = vadd.f32 0.0, %v696
        %698 = vmatmul.f32.gmra.mxu0 %v540
        %v699 = vpop.f32.mrf.mxu0
        %v700 = vadd.f32 0.0, %v699
        %701 = vmatmul.f32.gmra.mxu0 %v541
        %v702 = vpop.f32.mrf.mxu0
        %v703 = vadd.f32 0.0, %v702
        %704 = vmatmul.f32.gmra.mxu0 %v542
        %v705 = vpop.f32.mrf.mxu0
        %v706 = vadd.f32 0.0, %v705
        %707 = vmatmul.f32.gmra.mxu0 %v543
        %v708 = vpop.f32.mrf.mxu0
        %v709 = vadd.f32 0.0, %v708
        %710 = vmatmul.f32.gmra.mxu0 %v544
        %v711 = vpop.f32.mrf.mxu0
        %v712 = vadd.f32 0.0, %v711
        %713 = vmatmul.f32.gmra.mxu0 %v545
        %v714 = vpop.f32.mrf.mxu0
        %v715 = vadd.f32 0.0, %v714
        %716 = vdwg.mxu0
        %717 = vst [vmem:[%s328] sm:$0xff] %v612
        %718 = vst [vmem:[%s328 + $0x8] sm:$0xff] %v615
        %719 = vst [vmem:[%s328 + $0x10] sm:$0xff] %v618
        %720 = vst [vmem:[%s328 + $0x18] sm:$0xff] %v621
        %721 = vst [vmem:[%s328 + $0x20] sm:$0xff] %v624
        %722 = vst [vmem:[%s328 + $0x28] sm:$0xff] %v627
        %723 = vst [vmem:[%s328 + $0x30] sm:$0xff] %v630
        %724 = vst [vmem:[%s328 + $0x38] sm:$0xff] %v633
        %725 = vst [vmem:[%s335] sm:$0xff] %v653
        %726 = vst [vmem:[%s335 + $0x8] sm:$0xff] %v656
        %727 = vst [vmem:[%s335 + $0x10] sm:$0xff] %v659
        %728 = vst [vmem:[%s335 + $0x18] sm:$0xff] %v662
        %729 = vst [vmem:[%s335 + $0x20] sm:$0xff] %v665
        %730 = vst [vmem:[%s335 + $0x28] sm:$0xff] %v668
        %731 = vst [vmem:[%s335 + $0x30] sm:$0xff] %v671
        %732 = vst [vmem:[%s335 + $0x38] sm:$0xff] %v674
        %733 = vst [vmem:[%s342] sm:$0xff] %v694
        %734 = vst [vmem:[%s342 + $0x8] sm:$0xff] %v697
        %735 = vst [vmem:[%s342 + $0x10] sm:$0xff] %v700
        %736 = vst [vmem:[%s342 + $0x18] sm:$0xff] %v703
        %737 = vst [vmem:[%s342 + $0x20] sm:$0xff] %v706
        %738 = vst [vmem:[%s342 + $0x28] sm:$0xff] %v709
        %739 = vst [vmem:[%s342 + $0x30] sm:$0xff] %v712
        %740 = vst [vmem:[%s342 + $0x38] sm:$0xff] %v715
        %s741 = sand.u32 %s141, 1
        %s742 = scalar_lea.sflag [#allocation4], %s741
        %s743 = sand.u32 %s141, 1
        %s744 = smul.addr %s743, 64
        %s745 = scalar_lea.vmem [#allocation8], %s744
        %s746 = sand.u32 %s28, 1
        %s747 = scalar_lea.sflag [#allocation10], %s746
        %s748 = sand.u32 %s169, 1
        %s749 = smul.addr %s748, 64
        %s750 = scalar_lea.vmem [#allocation9], %s749
        %s751 = sand.u32 %s28, 1
        %s752 = scalar_lea.sflag [#allocation10], %s751
        %s753 = sand.u32 %s197, 1
        %s754 = smul.addr %s753, 64
        %s755 = scalar_lea.vmem [#allocation11], %s754
        // Predicated region
        $region49: #{tpu_custom_call.1} parent=35 // pred_check
          %p756 = pneg %p151
        $region50: #{tpu_custom_call.1} parent=35 // pred_check_branch
          %758 = sbr.rel (%p756) target = $region52
        $region51: #{tpu_custom_call.1} parent=35 // pred_region
          %s759 = smul.u32 8, %s33
          %761 = vsyncadd %s742, 0
          %s762 = smul.addr %s32, 16
          %s763 = sadd.s32 %s759, %s762
          %s764 = smul.addr %s763, 8
          %s765 = scalar_lea.hbm %s4, %s764
          %s766 = sshll.u32 %s745, 4
          %s767 = int_to_ptr.vmem [resolvable:$true] %s766
          %s768 = sshll.u32 %s765, 4
          %s769 = int_to_ptr.hbm [resolvable:$true] %s768
          %774 = dma.vmem_to_hbm [thread:$0]  %s767, 1024, %s769, %s742, 128, 128, 8
        $region52: #{tpu_custom_call.1} parent=35 // pred_fallthru
          _
        // Predicated region
        $region53: #{tpu_custom_call.1} parent=35 // pred_check
          %p775 = pneg %p179
        $region54: #{tpu_custom_call.1} parent=35 // pred_check_branch
          %777 = sbr.rel (%p775) target = $region56
        $region55: #{tpu_custom_call.1} parent=35 // pred_region
          %s778 = smul.u32 8, %s33
          %780 = vsyncadd %s747, 0
          %s781 = smul.addr %s32, 16
          %s782 = sadd.s32 %s778, %s781
          %s783 = smul.addr %s782, 8
          %s784 = scalar_lea.hbm %s5, %s783
          %s785 = sshll.u32 %s750, 4
          %s786 = int_to_ptr.vmem [resolvable:$true] %s785
          %s787 = sshll.u32 %s784, 4
          %s788 = int_to_ptr.hbm [resolvable:$true] %s787
          %793 = dma.vmem_to_hbm [thread:$0]  %s786, 1024, %s788, %s747, 128, 128, 8
        $region56: #{tpu_custom_call.1} parent=35 // pred_fallthru
          _
        // Predicated region
        $region57: #{tpu_custom_call.1} parent=35 // pred_check
          %p794 = pneg %p207
        $region58: #{tpu_custom_call.1} parent=35 // pred_check_branch
          %796 = sbr.rel (%p794) target = $region60
        $region59: #{tpu_custom_call.1} parent=35 // pred_region
          %s797 = smul.u32 8, %s33
          %799 = vsyncadd %s752, 0
          %s800 = smul.addr %s32, 16
          %s801 = sadd.s32 %s797, %s800
          %s802 = smul.addr %s801, 8
          %s803 = scalar_lea.hbm %s6, %s802
          %s804 = sshll.u32 %s755, 4
          %s805 = int_to_ptr.vmem [resolvable:$true] %s804
          %s806 = sshll.u32 %s803, 4
          %s807 = int_to_ptr.hbm [resolvable:$true] %s806
          %812 = dma.vmem_to_hbm [thread:$0]  %s805, 1024, %s807, %s752, 128, 128, 8
        $region60: #{tpu_custom_call.1} parent=35 // pred_fallthru
          _
      $region36: #{tpu_custom_call.1} parent=5 // pred_fallthru
        _
      %p813 = scmp.le.s32.totalorder 2, %s23
      // Predicated region
      $region61: #{tpu_custom_call.1} parent=5 // pred_check
        %p814 = pneg %p813
      $region62: #{tpu_custom_call.1} parent=5 // pred_check_branch
        %816 = sbr.rel (%p814) target = $region64
      $region63: #{tpu_custom_call.1} parent=5 // pred_region
        %s817 = ssub.s32 %s23, 2
        // Predicated region
        $region65: #{tpu_custom_call.1} parent=63 // pred_check
          %p818 = pneg %p157
        $region66: #{tpu_custom_call.1} parent=63 // pred_check_branch
          %820 = sbr.rel (%p818) target = $region68
        $region67: #{tpu_custom_call.1} parent=63 // pred_region
          %s821 = sand.u32 %s142, 1
          %s822 = scalar_lea.sflag [#allocation4], %s821
          %s823 = sand.u32 %s142, 1
          %s824 = smul.addr %s823, 64
          %s825 = scalar_lea.vmem [#allocation8], %s824
          %827 = dma.done %s822, 1024
        $region68: #{tpu_custom_call.1} parent=63 // pred_fallthru
          _
        // Predicated region
        $region69: #{tpu_custom_call.1} parent=63 // pred_check
          %p828 = pneg %p185
        $region70: #{tpu_custom_call.1} parent=63 // pred_check_branch
          %830 = sbr.rel (%p828) target = $region72
        $region71: #{tpu_custom_call.1} parent=63 // pred_region
          %s831 = sand.u32 %s29, 1
          %s832 = scalar_lea.sflag [#allocation10], %s831
          %s833 = sand.u32 %s170, 1
          %s834 = smul.addr %s833, 64
          %s835 = scalar_lea.vmem [#allocation9], %s834
          %837 = dma.done %s832, 1024
        $region72: #{tpu_custom_call.1} parent=63 // pred_fallthru
          _
        // Predicated region
        $region73: #{tpu_custom_call.1} parent=63 // pred_check
          %p838 = pneg %p213
        $region74: #{tpu_custom_call.1} parent=63 // pred_check_branch
          %840 = sbr.rel (%p838) target = $region76
        $region75: #{tpu_custom_call.1} parent=63 // pred_region
          %s841 = sand.u32 %s29, 1
          %s842 = scalar_lea.sflag [#allocation10], %s841
          %s843 = sand.u32 %s198, 1
          %s844 = smul.addr %s843, 64
          %s845 = scalar_lea.vmem [#allocation11], %s844
          %847 = dma.done %s842, 1024
        $region76: #{tpu_custom_call.1} parent=63 // pred_fallthru
          _
      $region64: #{tpu_custom_call.1} parent=5 // pred_fallthru
        _
    $region6: #{tpu_custom_call.1} parent=1 // loop_footer
      %s27 = sadd.s32 1, %s23
    $region7: #{tpu_custom_call.1} parent=1 // loop_footer_branch
      %22 = sbr.rel target = $region3
    $region8: #{tpu_custom_call.1} parent=1 // loop_exit
      _
    %848 = vsyncpa [#allocation3], 1
    %s849 = scalar_lea.sflag [#allocation3], 1
    %850 = vsyncpa %s849, 1
    %851 = vsyncpa [#allocation6], 1
    %852 = vsyncpa [#allocation4], 1
    %s853 = scalar_lea.sflag [#allocation4], 1
    %854 = vsyncpa %s853, 1
    %855 = vsyncpa [#allocation10], 1
    %s856 = scalar_lea.sflag [#allocation10], 1
    %857 = vsyncpa %s856, 1

</llo_original>
